<compile_context>
chip_gen: v7x
topology: tpu7x:2x2x1
jax: 0.10.0
libtpu: 0.0.40
codegen_flags: <defaults>
</compile_context>

<pallas_src>
import functools

import jax
import jax.numpy as jnp
from jax.experimental import pallas as pl
from jax.experimental.pallas import tpu as pltpu


def _round_up(x, m):
    return ((x + m - 1) // m) * m


def _focal_loss_kernel(x_ref, t_ref, o_ref, *, alpha, gamma, n_valid, tile_m,
                       num_classes):
    i = pl.program_id(0)

    logits = x_ref[...].astype(jnp.float32)            # (TM, C) widen in VMEM
    tgt_row = t_ref[...]                                # (1, TM) lane-dense int32

    # Target one-hot, built class-major so the lane-dense target row broadcasts
    # over sublanes with no relayout; one small, fully (8,128)-aligned f32
    # transpose brings it back to sample-major. Rides the otherwise idle XLU.
    c_pad8 = _round_up(num_classes, 8)
    cls = jax.lax.broadcasted_iota(jnp.int32, (c_pad8, tile_m), 0)
    onehot_cm = (cls == tgt_row).astype(jnp.float32)    # (c_pad8, TM)
    onehot = onehot_cm.T                                 # (TM, c_pad8)
    if c_pad8 != num_classes:
        onehot = onehot[:, :num_classes]                 # (TM, C)

    # numerically stable per-row logsumexp (single EUP exp pass over the tile)
    m = jnp.max(logits, axis=-1, keepdims=True)          # (TM, 1)
    e = jnp.exp(logits - m)                               # (TM, C)
    sum_e = jnp.sum(e, axis=-1, keepdims=True)            # (TM, 1)
    lse = m + jnp.log(sum_e)

    # gather logits[r, tgt[r]] and exp(logits[r, tgt[r]] - m[r]) via the one-hot
    sel = jnp.sum(onehot * logits, axis=-1, keepdims=True)
    e_sel = jnp.sum(onehot * e, axis=-1, keepdims=True)

    # clamp so rounding can never give pt > 1
    ce = jnp.maximum(lse - sel, 0.0)                      # (TM, 1)
    # pt == exp(-ce); computed from the existing exp tile (no 2nd EUP exp pass)
    pt = e_sel / sum_e

    omp = 1.0 - pt

    # (1 - pt) ** gamma : integer gamma -> repeated VPU multiplies (no exp/log)
    g = float(gamma)
    if g == int(g) and 0.0 <= g <= 32.0:
        gi = int(g)
        if gi == 0:
            weight = jnp.ones_like(omp)
        else:
            w = None
            b = omp
            while gi:
                if gi & 1:
                    w = b if w is None else w * b
                gi >>= 1
                if gi:
                    b = b * b
            weight = w
    else:
        weight = jnp.power(jnp.maximum(omp, 0.0), g)

    focal = alpha * weight * ce                           # (TM, 1)

    # mask ignore_index==0 AND rows past N (ragged last block / row padding);
    # applied last so NaN/Inf from garbage rows can never reach the sum.
    row = i * tile_m + jax.lax.broadcasted_iota(jnp.int32, (tile_m, 1), 0)
    is_ignored = onehot[:, 0:1] > 0.5                     # target == 0
    valid = jnp.logical_and(row < n_valid, jnp.logical_not(is_ignored))
    focal = jnp.where(valid, focal, 0.0)

    # per-block partial sum, stored lane-dense so the grid can be 'parallel'
    partial = jnp.sum(focal, axis=0, keepdims=True)       # (1, 1)
    o_ref[...] = jnp.broadcast_to(partial[None, :, :], (1, 1, 128))


def _choose_tile_m(n_rows, c, target_tile_bytes=1536 * 1024, max_rows=4096):
    """Rows per block (multiple of 128), sized from LANE-PADDED f32 bytes so the
    true VMEM footprint (widened logits, exp tile, one-hot, double-buffered
    native input) stays a few MiB even on v7x, while tiles remain big enough to
    amortize the ~0.35us per-grid-step overhead."""
    c_pad = _round_up(max(c, 1), 128)
    rows = target_tile_bytes // (4 * c_pad)
    rows = max(128, min(max_rows, (rows // 128) * 128))
    if n_rows <= 128:
        return 128
    # cap so the grid always has >= 2 blocks: lets ("parallel",) shard the grid
    # across both TensorCores on v7x (no effect on single-TC v5e/v6e).
    half = _round_up(pl.cdiv(n_rows, 2), 128)
    return min(rows, half)


def focal_loss(logits, targets, alpha=1.0, gamma=2.0, reduction="mean", tile_m=None):
    """logits: (N, C) float (f32/bf16), targets: (N,) int. Returns scalar."""
    n, c = logits.shape
    n_valid = n

    # Tiny-N case: pad rows up to 128 so every block keeps 128-aligned lanes for
    # the in-kernel (classes, rows) transpose. Pad rows use target=0 (ignored)
    # and are additionally masked by row < N in the kernel. Cheap (<128 rows).
    if n < 128:
        logits = jnp.pad(logits, ((0, 128 - n), (0, 0)))
        targets = jnp.pad(targets, (0, 128 - n))
        n_rows = 128
    else:
        n_rows = n

    if tile_m is None:
        tile_m = _choose_tile_m(n_rows, c)
    else:
        tile_m = max(128, (int(tile_m) // 128) * 128)
        tile_m = min(tile_m, max(128, (n_rows // 128) * 128))

    num_blocks = pl.cdiv(n_rows, tile_m)

    # lane-dense targets: one contiguous DMA per block, ~tile_m*4 B of VMEM
    # instead of the lane-sparse (tile_m, 1) layout's tile_m*512 B.
    targets_row = targets.astype(jnp.int32).reshape(1, n_rows)

    kernel = functools.partial(
        _focal_loss_kernel,
        alpha=float(alpha), gamma=float(gamma),
        n_valid=n_valid, tile_m=tile_m, num_classes=c,
    )

    # VMEM budget from lane-padded bytes (the real footprint), with headroom.
    c_pad = _round_up(max(c, 1), 128)
    tile_f32_bytes = tile_m * c_pad * 4
    vmem_limit = int(min(64 * 1024 * 1024, max(32 * 1024 * 1024, 12 * tile_f32_bytes)))

    partials = pl.pallas_call(
        kernel,
        out_shape=jax.ShapeDtypeStruct((num_blocks, 1, 128), jnp.float32),
        grid_spec=pltpu.PrefetchScalarGridSpec(
            num_scalar_prefetch=0,
            grid=(num_blocks,),
            in_specs=[
                pl.BlockSpec((tile_m, c), lambda i: (i, 0)),
                pl.BlockSpec((1, tile_m), lambda i: (0, i)),
            ],
            out_specs=pl.BlockSpec((1, 1, 128), lambda i: (i, 0, 0)),
        ),
        compiler_params=pltpu.CompilerParams(
            dimension_semantics=("parallel",),
            vmem_limit_bytes=vmem_limit,
        ),
    )(logits, targets_row)

    total = jnp.sum(partials[:, 0, 0])

    if reduction == "mean":
        return total / jnp.float32(n_valid)
    elif reduction == "sum":
        return total
    else:
        # TODO(synk): reduction='none' needs a per-sample output; only scalar
        # reductions are implemented here.
        raise NotImplementedError("only 'mean' and 'sum' reductions are implemented")


def _focal_loss_ref(logits, targets, alpha=1.0, gamma=2.0):
    # pure-JAX reference for sanity checking
    logits = logits.astype(jnp.float32)
    lse = jax.nn.logsumexp(logits, axis=-1)
    sel = jnp.take_along_axis(logits, targets[:, None], axis=-1)[:, 0]
    ce = jnp.where(targets == 0, 0.0, lse - sel)
    pt = jnp.exp(-ce)
    return jnp.mean(alpha * (1.0 - pt) ** gamma * ce)


if __name__ == "__main__":
    key = jax.random.PRNGKey(0)
    k1, k2, k3, k4 = jax.random.split(key, 4)

    # small shapes consistent with the module: 8 samples, 32 classes
    N, C = 8, 32
    logits = jax.random.normal(k1, (N, C), dtype=jnp.float32)
    targets = jax.random.randint(k2, (N,), 0, C, dtype=jnp.int32)
    targets = targets.at[1].set(0)   # exercise ignore_index=0

    out = focal_loss(logits, targets, alpha=1.0, gamma=2.0, reduction="mean")
    out = jax.block_until_ready(out)
    ref = _focal_loss_ref(logits, targets, alpha=1.0, gamma=2.0)
    assert jnp.allclose(out, ref, atol=1e-5, rtol=1e-5), (out, ref)

    # multi-block grid (3 blocks of 128 rows) with a ragged last tile
    N2, C2 = 300, 32
    logits2 = jax.random.normal(k3, (N2, C2), dtype=jnp.float32)
    targets2 = jax.random.randint(k4, (N2,), 0, C2, dtype=jnp.int32)
    targets2 = targets2.at[7].set(0)

    out2 = focal_loss(logits2, targets2, alpha=1.0, gamma=2.0,
                      reduction="mean", tile_m=128)
    out2 = jax.block_until_ready(out2)
    ref2 = _focal_loss_ref(logits2, targets2, alpha=1.0, gamma=2.0)
    assert jnp.allclose(out2, ref2, atol=1e-5, rtol=1e-5), (out2, ref2)

    # bf16 ingest path (half the HBM traffic; widened to f32 only inside VMEM),
    # default tiling -> 2 blocks of 256 rows for megacore.
    logits3 = logits2.astype(jnp.bfloat16)
    out3 = focal_loss(logits3, targets2, alpha=1.0, gamma=2.0, reduction="mean")
    out3 = jax.block_until_ready(out3)
    ref3 = _focal_loss_ref(logits3.astype(jnp.float32), targets2)
    assert jnp.allclose(out3, ref3, atol=1e-4, rtol=1e-4), (out3, ref3)

    print("KERNEL_OK")
</pallas_src>

<mosaic_0001>
module attributes {stable_mosaic.version = 11 : i64} {
  func.func @_focal_loss_kernel(%arg0: i32, %arg1: memref<128x32xf32, #tpu.memory_space<vmem>>, %arg2: memref<1x128xi32, #tpu.memory_space<vmem>>, %arg3: memref<1x1x128xf32, #tpu.memory_space<vmem>>) attributes {dimension_semantics = [#tpu.dimension_semantics<parallel>], iteration_bounds = array<i64: 1>, scalar_prefetch = 0 : i64, scratch_operands = 0 : i64, tpu.core_type = #tpu.core_type<tc>, window_params = [{transform_indices = @transform_0, window_bounds = array<i64: 128, 32>}, {transform_indices = @transform_1, window_bounds = array<i64: 1, 128>}, {transform_indices = @transform_2, window_bounds = array<i64: 1, 1, 128>}]} {
    %c0 = arith.constant 0 : index
    %c0_0 = arith.constant 0 : index
    %0 = vector.load %arg1[%c0, %c0_0] : memref<128x32xf32, #tpu.memory_space<vmem>>, vector<128x32xf32>
    %c0_1 = arith.constant 0 : index
    %c0_2 = arith.constant 0 : index
    %1 = vector.load %arg2[%c0_1, %c0_2] : memref<1x128xi32, #tpu.memory_space<vmem>>, vector<1x128xi32>
    %2 = tpu.iota {dimensions = array<i32: 0>} : vector<32x128xi32>
    %3 = vector.broadcast %1 : vector<1x128xi32> to vector<32x128xi32>
    %4 = arith.cmpi eq, %2, %3 : vector<32x128xi32>
    %5 = arith.extui %4 : vector<32x128xi1> to vector<32x128xi32>
    %6 = arith.sitofp %5 : vector<32x128xi32> to vector<32x128xf32>
    %7 = tpu.transpose %6, [1, 0] : vector<32x128xf32> -> vector<128x32xf32>
    %cst = arith.constant dense<0xFF800000> : vector<128xf32>
    %8 = vector.multi_reduction <maximumf>, %0, %cst [1] : vector<128x32xf32> to vector<128xf32>
    %9 = vector.shape_cast %8 : vector<128xf32> to vector<128x1xf32>
    %10 = vector.broadcast %9 : vector<128x1xf32> to vector<128x32xf32>
    %11 = arith.subf %0, %10 : vector<128x32xf32>
    %12 = math.exp %11 : vector<128x32xf32>
    %cst_3 = arith.constant dense<0.000000e+00> : vector<128xf32>
    %13 = vector.multi_reduction <add>, %12, %cst_3 [1] : vector<128x32xf32> to vector<128xf32>
    %14 = vector.shape_cast %13 : vector<128xf32> to vector<128x1xf32>
    %15 = math.log %14 : vector<128x1xf32>
    %16 = arith.addf %9, %15 : vector<128x1xf32>
    %17 = arith.mulf %7, %0 : vector<128x32xf32>
    %cst_4 = arith.constant dense<0.000000e+00> : vector<128xf32>
    %18 = vector.multi_reduction <add>, %17, %cst_4 [1] : vector<128x32xf32> to vector<128xf32>
    %19 = vector.shape_cast %18 : vector<128xf32> to vector<128x1xf32>
    %20 = arith.mulf %7, %12 : vector<128x32xf32>
    %cst_5 = arith.constant dense<0.000000e+00> : vector<128xf32>
    %21 = vector.multi_reduction <add>, %20, %cst_5 [1] : vector<128x32xf32> to vector<128xf32>
    %22 = vector.shape_cast %21 : vector<128xf32> to vector<128x1xf32>
    %23 = arith.subf %16, %19 : vector<128x1xf32>
    %cst_6 = arith.constant 0.000000e+00 : f32
    %24 = vector.broadcast %cst_6 : f32 to vector<128x1xf32>
    %25 = arith.maximumf %23, %24 : vector<128x1xf32>
    %26 = arith.divf %22, %14 : vector<128x1xf32>
    %cst_7 = arith.constant 1.000000e+00 : f32
    %27 = vector.broadcast %cst_7 : f32 to vector<128x1xf32>
    %28 = arith.subf %27, %26 : vector<128x1xf32>
    %29 = arith.mulf %28, %28 : vector<128x1xf32>
    %cst_8 = arith.constant 1.000000e+00 : f32
    %30 = vector.broadcast %cst_8 : f32 to vector<128x1xf32>
    %31 = arith.mulf %30, %29 : vector<128x1xf32>
    %32 = arith.mulf %31, %25 : vector<128x1xf32>
    %c128_i32 = arith.constant 128 : i32
    %33 = arith.muli %arg0, %c128_i32 : i32
    %34 = tpu.iota {dimensions = array<i32: 0>} : vector<128x1xi32>
    %35 = vector.broadcast %33 : i32 to vector<128x1xi32>
    %36 = arith.addi %35, %34 : vector<128x1xi32>
    %37 = vector.extract_strided_slice %7 {offsets = [0, 0], sizes = [128, 1], strides = [1, 1]} : vector<128x32xf32> to vector<128x1xf32>
    %cst_9 = arith.constant 5.000000e-01 : f32
    %38 = vector.broadcast %cst_9 : f32 to vector<128x1xf32>
    %39 = arith.cmpf ogt, %37, %38 : vector<128x1xf32>
    %c8_i32 = arith.constant 8 : i32
    %40 = vector.broadcast %c8_i32 : i32 to vector<128x1xi32>
    %41 = arith.cmpi slt, %36, %40 : vector<128x1xi32>
    %cst_10 = arith.constant dense<true> : vector<128x1xi1>
    %42 = arith.xori %39, %cst_10 : vector<128x1xi1>
    %43 = arith.andi %41, %42 : vector<128x1xi1>
    %cst_11 = arith.constant 0.000000e+00 : f32
    %44 = vector.broadcast %cst_11 : f32 to vector<128x1xf32>
    %45 = arith.select %43, %32, %44 : vector<128x1xi1>, vector<128x1xf32>
    %cst_12 = arith.constant dense<0.000000e+00> : vector<1xf32>
    %46 = vector.multi_reduction <add>, %45, %cst_12 [0] : vector<128x1xf32> to vector<1xf32>
    %47 = vector.shape_cast %46 : vector<1xf32> to vector<1x1xf32>
    %48 = vector.shape_cast %47 : vector<1x1xf32> to vector<1x1x1xf32>
    %49 = vector.shape_cast %48 : vector<1x1x1xf32> to vector<1x1x1xf32>
    %50 = vector.broadcast %49 : vector<1x1x1xf32> to vector<1x1x128xf32>
    %c0_13 = arith.constant 0 : index
    %c0_14 = arith.constant 0 : index
    %c0_15 = arith.constant 0 : index
    %51 = vector.load %arg3[%c0_13, %c0_14, %c0_15] : memref<1x1x128xf32, #tpu.memory_space<vmem>>, vector<1x1x128xf32>
    tpu.vector_store %arg3[%c0_13, %c0_14, %c0_15], %50 {strides = array<i32>} : memref<1x1x128xf32, #tpu.memory_space<vmem>>, vector<1x1x128xf32>,
    return
  }
  func.func @transform_0(%arg0: i32) -> (i32, i32) {
    %c0_i32 = arith.constant 0 : i32
    %c0_i32_0 = arith.constant 0 : i32
    return %arg0, %c0_i32 : i32, i32
  }
  func.func @transform_1(%arg0: i32) -> (i32, i32) {
    %c0_i32 = arith.constant 0 : i32
    %c0_i32_0 = arith.constant 0 : i32
    return %c0_i32, %arg0 : i32, i32
  }
  func.func @transform_2(%arg0: i32) -> (i32, i32, i32) {
    %c0_i32 = arith.constant 0 : i32
    %c0_i32_0 = arith.constant 0 : i32
    %c0_i32_1 = arith.constant 0 : i32
    return %arg0, %c0_i32, %c0_i32_0 : i32, i32, i32
  }
}

</mosaic_0001>

<llo_original>
// kernel: tpu_custom_call.1
$region0: #{tpu_custom_call.1}
  #allocation0 [shape = 'u32[]', space=smem, size = 0x4, offset = 0x4, fixed_abs, tag = 'smem constant byte address 0x4 - core index']
  #allocation1 [shape = 'u32[144,128]{1,0:T(1,128)}', space=vmem, size = 0x12000, scoped, tag = 'internal scratch']
  %s0 = inlined_call_operand.vmem [shape: f32[128,32], index: 0, kind: input, shape index: {}]
  %s1 = inlined_call_operand.vmem [shape: s32[1,128], index: 1, kind: input, shape index: {}]
  %s2 = inlined_call_operand.hbm [shape: f32[1,1,128], index: 2, kind: output, shape index: {}]
  %s3 = sld [smem:[#allocation0]]
  $region18: #{tpu_custom_call.1} parent=0
    _
  %s5 = ssub.s32 1, %s3
  %s6 = scalar_select 0, %s5, %s3
  $region1: #{tpu_custom_call.1} parent=0
    #allocation2 [shape = 'u8[512]{0}', space=vmem, size = 0x400, scoped, tag = 'output window, operand 0, single buffered']
    #allocation3 [shape = 's32[1]{0}', space=sflag, size = 0x4, scoped, tag = 'scoped memory for tpu_custom_call.1']
    %7 = vsyncpa [#allocation3], 0
    // Predicated region
    $region2: #{tpu_custom_call.1} parent=1 // pred_check
      _
    $region3: #{tpu_custom_call.1} parent=1 // pred_check_branch
      %9 = sbr.rel (0) target = $region5
    $region4: #{tpu_custom_call.1} parent=1 // pred_region
      _
    $region5: #{tpu_custom_call.1} parent=1 // pred_fallthru
      _
    // Predicated region
    $region6: #{tpu_custom_call.1} parent=1 // pred_check
      _
    $region7: #{tpu_custom_call.1} parent=1 // pred_check_branch
      %11 = sbr.rel (0) target = $region9
    $region8: #{tpu_custom_call.1} parent=1 // pred_region
      _
    $region9: #{tpu_custom_call.1} parent=1 // pred_fallthru
      _
    %v12 = vld [vmem:[%s0] sm:$0xff]
    %v13 = vld [vmem:[%s0 + $0x8] sm:$0xff]
    %v14 = vld [vmem:[%s0 + $0x10] sm:$0xff]
    %v15 = vld [vmem:[%s0 + $0x18] sm:$0xff]
    %v16 = vld [vmem:[%s0 + $0x20] sm:$0xff]
    %v17 = vld [vmem:[%s0 + $0x28] sm:$0xff]
    %v18 = vld [vmem:[%s0 + $0x30] sm:$0xff]
    %v19 = vld [vmem:[%s0 + $0x38] sm:$0xff]
    %v20 = vld [vmem:[%s0 + $0x40] sm:$0xff]
    %v21 = vld [vmem:[%s0 + $0x48] sm:$0xff]
    %v22 = vld [vmem:[%s0 + $0x50] sm:$0xff]
    %v23 = vld [vmem:[%s0 + $0x58] sm:$0xff]
    %v24 = vld [vmem:[%s0 + $0x60] sm:$0xff]
    %v25 = vld [vmem:[%s0 + $0x68] sm:$0xff]
    %v26 = vld [vmem:[%s0 + $0x70] sm:$0xff]
    %v27 = vld [vmem:[%s0 + $0x78] sm:$0xff]
    %v28 = vld [vmem:[%s1] sm:$0x1]
    %v29 = vlaneseq
    %v30 = vshrl.u32 %v29, 7
    %v31 = vadd.s32 %v30, 8
    %v32 = vadd.s32 %v30, 16
    %v33 = vadd.s32 %v30, 24
    %v34 = vlaneseq
    %v35 = vshrl.u32 %v34, 7
    %v36 = vsub.s32 0, %v35
    %v37 = vrot.slane %v28, %v36
    %vm38 = vcmp.eq.s32.totalorder %v30, %v37
    %vm39 = vcmp.eq.s32.totalorder %v31, %v37
    %vm40 = vcmp.eq.s32.totalorder %v32, %v37
    %vm41 = vcmp.eq.s32.totalorder %v33, %v37
    %v42 = vsel %vm38, 1, 0
    %v43 = vsel %vm39, 1, 0
    %v44 = vsel %vm40, 1, 0
    %v45 = vsel %vm41, 1, 0
    %v46 = vcvt.s32.f32 %v42
    %v47 = vcvt.s32.f32 %v43
    %v48 = vcvt.s32.f32 %v44
    %v49 = vcvt.s32.f32 %v45
    %50 = vxpose.xlu0.b32.start [1/16] %v46, 128
    %51 = vxpose.xlu0.b32.cont [2/16] %v47, 128
    %52 = vxpose.xlu0.b32.cont [3/16] %v48, 128
    %53 = vxpose.xlu0.b32.cont [4/16] %v49, 128
    %54 = vxpose.xlu0.b32.cont [5/16] 0.0, 128
    %55 = vxpose.xlu0.b32.cont [6/16] 0.0, 128
    %56 = vxpose.xlu0.b32.cont [7/16] 0.0, 128
    %57 = vxpose.xlu0.b32.cont [8/16] 0.0, 128
    %58 = vxpose.xlu0.b32.cont [9/16] 0.0, 128
    %59 = vxpose.xlu0.b32.cont [10/16] 0.0, 128
    %60 = vxpose.xlu0.b32.cont [11/16] 0.0, 128
    %61 = vxpose.xlu0.b32.cont [12/16] 0.0, 128
    %62 = vxpose.xlu0.b32.cont [13/16] 0.0, 128
    %63 = vxpose.xlu0.b32.cont [14/16] 0.0, 128
    %64 = vxpose.xlu0.b32.cont [15/16] 0.0, 128
    %65 = vxpose.xlu0.b32.end [16/16] 0.0, 128
    %v66 = vpop.trf.xlu0
    %v67 = vpop.trf.xlu0
    %v68 = vpop.trf.xlu0
    %v69 = vpop.trf.xlu0
    %v70 = vpop.trf.xlu0
    %v71 = vpop.trf.xlu0
    %v72 = vpop.trf.xlu0
    %v73 = vpop.trf.xlu0
    %v74 = vpop.trf.xlu0
    %v75 = vpop.trf.xlu0
    %v76 = vpop.trf.xlu0
    %v77 = vpop.trf.xlu0
    %v78 = vpop.trf.xlu0
    %v79 = vpop.trf.xlu0
    %v80 = vpop.trf.xlu0
    %v81 = vpop.trf.xlu0
    %vm82 = vcmask 261120
    %v83 = vsel %vm82, %v12, -inf
    %84 = vmax.xlane.f32.xlu0 %v83
    %v85 = vpop.xlane.xlu0 %84
    %v86 = vsel %vm82, %v13, -inf
    %87 = vmax.xlane.f32.xlu0 %v86
    %v88 = vpop.xlane.xlu0 %87
    %v89 = vsel %vm82, %v14, -inf
    %90 = vmax.xlane.f32.xlu0 %v89
    %v91 = vpop.xlane.xlu0 %90
    %v92 = vsel %vm82, %v15, -inf
    %93 = vmax.xlane.f32.xlu0 %v92
    %v94 = vpop.xlane.xlu0 %93
    %v95 = vsel %vm82, %v16, -inf
    %96 = vmax.xlane.f32.xlu0 %v95
    %v97 = vpop.xlane.xlu0 %96
    %v98 = vsel %vm82, %v17, -inf
    %99 = vmax.xlane.f32.xlu0 %v98
    %v100 = vpop.xlane.xlu0 %99
    %v101 = vsel %vm82, %v18, -inf
    %102 = vmax.xlane.f32.xlu0 %v101
    %v103 = vpop.xlane.xlu0 %102
    %v104 = vsel %vm82, %v19, -inf
    %105 = vmax.xlane.f32.xlu0 %v104
    %v106 = vpop.xlane.xlu0 %105
    %v107 = vsel %vm82, %v20, -inf
    %108 = vmax.xlane.f32.xlu0 %v107
    %v109 = vpop.xlane.xlu0 %108
    %v110 = vsel %vm82, %v21, -inf
    %111 = vmax.xlane.f32.xlu0 %v110
    %v112 = vpop.xlane.xlu0 %111
    %v113 = vsel %vm82, %v22, -inf
    %114 = vmax.xlane.f32.xlu0 %v113
    %v115 = vpop.xlane.xlu0 %114
    %v116 = vsel %vm82, %v23, -inf
    %117 = vmax.xlane.f32.xlu0 %v116
    %v118 = vpop.xlane.xlu0 %117
    %v119 = vsel %vm82, %v24, -inf
    %120 = vmax.xlane.f32.xlu0 %v119
    %v121 = vpop.xlane.xlu0 %120
    %v122 = vsel %vm82, %v25, -inf
    %123 = vmax.xlane.f32.xlu0 %v122
    %v124 = vpop.xlane.xlu0 %123
    %v125 = vsel %vm82, %v26, -inf
    %126 = vmax.xlane.f32.xlu0 %v125
    %v127 = vpop.xlane.xlu0 %126
    %v128 = vsel %vm82, %v27, -inf
    %129 = vmax.xlane.f32.xlu0 %v128
    %v130 = vpop.xlane.xlu0 %129
    %v131 = vsub.f32 %v12, %v85
    %v132 = vsub.f32 %v13, %v88
    %v133 = vsub.f32 %v14, %v91
    %v134 = vsub.f32 %v15, %v94
    %v135 = vsub.f32 %v16, %v97
    %v136 = vsub.f32 %v17, %v100
    %v137 = vsub.f32 %v18, %v103
    %v138 = vsub.f32 %v19, %v106
    %v139 = vsub.f32 %v20, %v109
    %v140 = vsub.f32 %v21, %v112
    %v141 = vsub.f32 %v22, %v115
    %v142 = vsub.f32 %v23, %v118
    %v143 = vsub.f32 %v24, %v121
    %v144 = vsub.f32 %v25, %v124
    %v145 = vsub.f32 %v26, %v127
    %v146 = vsub.f32 %v27, %v130
    %v147 = vmul.f32 %v131, 1.442695
    %v148 = vpow.pop %v147
    %v149 = vmul.f32 %v132, 1.442695
    %v150 = vpow.pop %v149
    %v151 = vmul.f32 %v133, 1.442695
    %v152 = vpow.pop %v151
    %v153 = vmul.f32 %v134, 1.442695
    %v154 = vpow.pop %v153
    %v155 = vmul.f32 %v135, 1.442695
    %v156 = vpow.pop %v155
    %v157 = vmul.f32 %v136, 1.442695
    %v158 = vpow.pop %v157
    %v159 = vmul.f32 %v137, 1.442695
    %v160 = vpow.pop %v159
    %v161 = vmul.f32 %v138, 1.442695
    %v162 = vpow.pop %v161
    %v163 = vmul.f32 %v139, 1.442695
    %v164 = vpow.pop %v163
    %v165 = vmul.f32 %v140, 1.442695
    %v166 = vpow.pop %v165
    %v167 = vmul.f32 %v141, 1.442695
    %v168 = vpow.pop %v167
    %v169 = vmul.f32 %v142, 1.442695
    %v170 = vpow.pop %v169
    %v171 = vmul.f32 %v143, 1.442695
    %v172 = vpow.pop %v171
    %v173 = vmul.f32 %v144, 1.442695
    %v174 = vpow.pop %v173
    %v175 = vmul.f32 %v145, 1.442695
    %v176 = vpow.pop %v175
    %v177 = vmul.f32 %v146, 1.442695
    %v178 = vpow.pop %v177
    %v179 = vsel %vm82, %v148, 0.0
    %180 = vadd.xlane.f32.xlu0 %v179
    %v181 = vpop.xlane.xlu0 %180
    %v182 = vsel %vm82, %v150, 0.0
    %183 = vadd.xlane.f32.xlu0 %v182
    %v184 = vpop.xlane.xlu0 %183
    %v185 = vsel %vm82, %v152, 0.0
    %186 = vadd.xlane.f32.xlu0 %v185
    %v187 = vpop.xlane.xlu0 %186
    %v188 = vsel %vm82, %v154, 0.0
    %189 = vadd.xlane.f32.xlu0 %v188
    %v190 = vpop.xlane.xlu0 %189
    %v191 = vsel %vm82, %v156, 0.0
    %192 = vadd.xlane.f32.xlu0 %v191
    %v193 = vpop.xlane.xlu0 %192
    %v194 = vsel %vm82, %v158, 0.0
    %195 = vadd.xlane.f32.xlu0 %v194
    %v196 = vpop.xlane.xlu0 %195
    %v197 = vsel %vm82, %v160, 0.0
    %198 = vadd.xlane.f32.xlu0 %v197
    %v199 = vpop.xlane.xlu0 %198
    %v200 = vsel %vm82, %v162, 0.0
    %201 = vadd.xlane.f32.xlu0 %v200
    %v202 = vpop.xlane.xlu0 %201
    %v203 = vsel %vm82, %v164, 0.0
    %204 = vadd.xlane.f32.xlu0 %v203
    %v205 = vpop.xlane.xlu0 %204
    %v206 = vsel %vm82, %v166, 0.0
    %207 = vadd.xlane.f32.xlu0 %v206
    %v208 = vpop.xlane.xlu0 %207
    %v209 = vsel %vm82, %v168, 0.0
    %210 = vadd.xlane.f32.xlu0 %v209
    %v211 = vpop.xlane.xlu0 %210
    %v212 = vsel %vm82, %v170, 0.0
    %213 = vadd.xlane.f32.xlu0 %v212
    %v214 = vpop.xlane.xlu0 %213
    %v215 = vsel %vm82, %v172, 0.0
    %216 = vadd.xlane.f32.xlu0 %v215
    %v217 = vpop.xlane.xlu0 %216
    %v218 = vsel %vm82, %v174, 0.0
    %219 = vadd.xlane.f32.xlu0 %v218
    %v220 = vpop.xlane.xlu0 %219
    %v221 = vsel %vm82, %v176, 0.0
    %222 = vadd.xlane.f32.xlu0 %v221
    %v223 = vpop.xlane.xlu0 %222
    %v224 = vsel %vm82, %v178, 0.0
    %225 = vadd.xlane.f32.xlu0 %v224
    %v226 = vpop.xlane.xlu0 %225
    %v227 = vlog2.pop %v181
    %v228 = vmul.f32 %v227, 0.6931472
    %v229 = vlog2.pop %v184
    %v230 = vmul.f32 %v229, 0.6931472
    %v231 = vlog2.pop %v187
    %v232 = vmul.f32 %v231, 0.6931472
    %v233 = vlog2.pop %v190
    %v234 = vmul.f32 %v233, 0.6931472
    %v235 = vlog2.pop %v193
    %v236 = vmul.f32 %v235, 0.6931472
    %v237 = vlog2.pop %v196
    %v238 = vmul.f32 %v237, 0.6931472
    %v239 = vlog2.pop %v199
    %v240 = vmul.f32 %v239, 0.6931472
    %v241 = vlog2.pop %v202
    %v242 = vmul.f32 %v241, 0.6931472
    %v243 = vlog2.pop %v205
    %v244 = vmul.f32 %v243, 0.6931472
    %v245 = vlog2.pop %v208
    %v246 = vmul.f32 %v245, 0.6931472
    %v247 = vlog2.pop %v211
    %v248 = vmul.f32 %v247, 0.6931472
    %v249 = vlog2.pop %v214
    %v250 = vmul.f32 %v249, 0.6931472
    %v251 = vlog2.pop %v217
    %v252 = vmul.f32 %v251, 0.6931472
    %v253 = vlog2.pop %v220
    %v254 = vmul.f32 %v253, 0.6931472
    %v255 = vlog2.pop %v223
    %v256 = vmul.f32 %v255, 0.6931472
    %v257 = vlog2.pop %v226
    %v258 = vmul.f32 %v257, 0.6931472
    %v259 = vadd.f32 %v85, %v228
    %v260 = vadd.f32 %v88, %v230
    %v261 = vadd.f32 %v91, %v232
    %v262 = vadd.f32 %v94, %v234
    %v263 = vadd.f32 %v97, %v236
    %v264 = vadd.f32 %v100, %v238
    %v265 = vadd.f32 %v103, %v240
    %v266 = vadd.f32 %v106, %v242
    %v267 = vadd.f32 %v109, %v244
    %v268 = vadd.f32 %v112, %v246
    %v269 = vadd.f32 %v115, %v248
    %v270 = vadd.f32 %v118, %v250
    %v271 = vadd.f32 %v121, %v252
    %v272 = vadd.f32 %v124, %v254
    %v273 = vadd.f32 %v127, %v256
    %v274 = vadd.f32 %v130, %v258
    %v275 = vmul.f32 %v66, %v12
    %v276 = vmul.f32 %v67, %v13
    %v277 = vmul.f32 %v68, %v14
    %v278 = vmul.f32 %v69, %v15
    %v279 = vmul.f32 %v70, %v16
    %v280 = vmul.f32 %v71, %v17
    %v281 = vmul.f32 %v72, %v18
    %v282 = vmul.f32 %v73, %v19
    %v283 = vmul.f32 %v74, %v20
    %v284 = vmul.f32 %v75, %v21
    %v285 = vmul.f32 %v76, %v22
    %v286 = vmul.f32 %v77, %v23
    %v287 = vmul.f32 %v78, %v24
    %v288 = vmul.f32 %v79, %v25
    %v289 = vmul.f32 %v80, %v26
    %v290 = vmul.f32 %v81, %v27
    %v291 = vsel %vm82, %v275, 0.0
    %292 = vadd.xlane.f32.xlu0 %v291
    %v293 = vpop.xlane.xlu0 %292
    %v294 = vsel %vm82, %v276, 0.0
    %295 = vadd.xlane.f32.xlu0 %v294
    %v296 = vpop.xlane.xlu0 %295
    %v297 = vsel %vm82, %v277, 0.0
    %298 = vadd.xlane.f32.xlu0 %v297
    %v299 = vpop.xlane.xlu0 %298
    %v300 = vsel %vm82, %v278, 0.0
    %301 = vadd.xlane.f32.xlu0 %v300
    %v302 = vpop.xlane.xlu0 %301
    %v303 = vsel %vm82, %v279, 0.0
    %304 = vadd.xlane.f32.xlu0 %v303
    %v305 = vpop.xlane.xlu0 %304
    %v306 = vsel %vm82, %v280, 0.0
    %307 = vadd.xlane.f32.xlu0 %v306
    %v308 = vpop.xlane.xlu0 %307
    %v309 = vsel %vm82, %v281, 0.0
    %310 = vadd.xlane.f32.xlu0 %v309
    %v311 = vpop.xlane.xlu0 %310
    %v312 = vsel %vm82, %v282, 0.0
    %313 = vadd.xlane.f32.xlu0 %v312
    %v314 = vpop.xlane.xlu0 %313
    %v315 = vsel %vm82, %v283, 0.0
    %316 = vadd.xlane.f32.xlu0 %v315
    %v317 = vpop.xlane.xlu0 %316
    %v318 = vsel %vm82, %v284, 0.0
    %319 = vadd.xlane.f32.xlu0 %v318
    %v320 = vpop.xlane.xlu0 %319
    %v321 = vsel %vm82, %v285, 0.0
    %322 = vadd.xlane.f32.xlu0 %v321
    %v323 = vpop.xlane.xlu0 %322
    %v324 = vsel %vm82, %v286, 0.0
    %325 = vadd.xlane.f32.xlu0 %v324
    %v326 = vpop.xlane.xlu0 %325
    %v327 = vsel %vm82, %v287, 0.0
    %328 = vadd.xlane.f32.xlu0 %v327
    %v329 = vpop.xlane.xlu0 %328
    %v330 = vsel %vm82, %v288, 0.0
    %331 = vadd.xlane.f32.xlu0 %v330
    %v332 = vpop.xlane.xlu0 %331
    %v333 = vsel %vm82, %v289, 0.0
    %334 = vadd.xlane.f32.xlu0 %v333
    %v335 = vpop.xlane.xlu0 %334
    %v336 = vsel %vm82, %v290, 0.0
    %337 = vadd.xlane.f32.xlu0 %v336
    %v338 = vpop.xlane.xlu0 %337
    %v339 = vmul.f32 %v66, %v148
    %v340 = vmul.f32 %v67, %v150
    %v341 = vmul.f32 %v68, %v152
    %v342 = vmul.f32 %v69, %v154
    %v343 = vmul.f32 %v70, %v156
    %v344 = vmul.f32 %v71, %v158
    %v345 = vmul.f32 %v72, %v160
    %v346 = vmul.f32 %v73, %v162
    %v347 = vmul.f32 %v74, %v164
    %v348 = vmul.f32 %v75, %v166
    %v349 = vmul.f32 %v76, %v168
    %v350 = vmul.f32 %v77, %v170
    %v351 = vmul.f32 %v78, %v172
    %v352 = vmul.f32 %v79, %v174
    %v353 = vmul.f32 %v80, %v176
    %v354 = vmul.f32 %v81, %v178
    %v355 = vsel %vm82, %v339, 0.0
    %356 = vadd.xlane.f32.xlu0 %v355
    %v357 = vpop.xlane.xlu0 %356
    %v358 = vsel %vm82, %v340, 0.0
    %359 = vadd.xlane.f32.xlu0 %v358
    %v360 = vpop.xlane.xlu0 %359
    %v361 = vsel %vm82, %v341, 0.0
    %362 = vadd.xlane.f32.xlu0 %v361
    %v363 = vpop.xlane.xlu0 %362
    %v364 = vsel %vm82, %v342, 0.0
    %365 = vadd.xlane.f32.xlu0 %v364
    %v366 = vpop.xlane.xlu0 %365
    %v367 = vsel %vm82, %v343, 0.0
    %368 = vadd.xlane.f32.xlu0 %v367
    %v369 = vpop.xlane.xlu0 %368
    %v370 = vsel %vm82, %v344, 0.0
    %371 = vadd.xlane.f32.xlu0 %v370
    %v372 = vpop.xlane.xlu0 %371
    %v373 = vsel %vm82, %v345, 0.0
    %374 = vadd.xlane.f32.xlu0 %v373
    %v375 = vpop.xlane.xlu0 %374
    %v376 = vsel %vm82, %v346, 0.0
    %377 = vadd.xlane.f32.xlu0 %v376
    %v378 = vpop.xlane.xlu0 %377
    %v379 = vsel %vm82, %v347, 0.0
    %380 = vadd.xlane.f32.xlu0 %v379
    %v381 = vpop.xlane.xlu0 %380
    %v382 = vsel %vm82, %v348, 0.0
    %383 = vadd.xlane.f32.xlu0 %v382
    %v384 = vpop.xlane.xlu0 %383
    %v385 = vsel %vm82, %v349, 0.0
    %386 = vadd.xlane.f32.xlu0 %v385
    %v387 = vpop.xlane.xlu0 %386
    %v388 = vsel %vm82, %v350, 0.0
    %389 = vadd.xlane.f32.xlu0 %v388
    %v390 = vpop.xlane.xlu0 %389
    %v391 = vsel %vm82, %v351, 0.0
    %392 = vadd.xlane.f32.xlu0 %v391
    %v393 = vpop.xlane.xlu0 %392
    %v394 = vsel %vm82, %v352, 0.0
    %395 = vadd.xlane.f32.xlu0 %v394
    %v396 = vpop.xlane.xlu0 %395
    %v397 = vsel %vm82, %v353, 0.0
    %398 = vadd.xlane.f32.xlu0 %v397
    %v399 = vpop.xlane.xlu0 %398
    %v400 = vsel %vm82, %v354, 0.0
    %401 = vadd.xlane.f32.xlu0 %v400
    %v402 = vpop.xlane.xlu0 %401
    %v403 = vsub.f32 %v259, %v293
    %v404 = vsub.f32 %v260, %v296
    %v405 = vsub.f32 %v261, %v299
    %v406 = vsub.f32 %v262, %v302
    %v407 = vsub.f32 %v263, %v305
    %v408 = vsub.f32 %v264, %v308
    %v409 = vsub.f32 %v265, %v311
    %v410 = vsub.f32 %v266, %v314
    %v411 = vsub.f32 %v267, %v317
    %v412 = vsub.f32 %v268, %v320
    %v413 = vsub.f32 %v269, %v323
    %v414 = vsub.f32 %v270, %v326
    %v415 = vsub.f32 %v271, %v329
    %v416 = vsub.f32 %v272, %v332
    %v417 = vsub.f32 %v273, %v335
    %v418 = vsub.f32 %v274, %v338
    %v419 = vmax.f32 %v403, 0.0
    %v420 = vmax.f32 %v404, 0.0
    %v421 = vmax.f32 %v405, 0.0
    %v422 = vmax.f32 %v406, 0.0
    %v423 = vmax.f32 %v407, 0.0
    %v424 = vmax.f32 %v408, 0.0
    %v425 = vmax.f32 %v409, 0.0
    %v426 = vmax.f32 %v410, 0.0
    %v427 = vmax.f32 %v411, 0.0
    %v428 = vmax.f32 %v412, 0.0
    %v429 = vmax.f32 %v413, 0.0
    %v430 = vmax.f32 %v414, 0.0
    %v431 = vmax.f32 %v415, 0.0
    %v432 = vmax.f32 %v416, 0.0
    %v433 = vmax.f32 %v417, 0.0
    %v434 = vmax.f32 %v418, 0.0
    %v435 = vrcp.pop %v181
    %v436 = vmul.f32 %v357, %v435
    %v437 = vrcp.pop %v184
    %v438 = vmul.f32 %v360, %v437
    %v439 = vrcp.pop %v187
    %v440 = vmul.f32 %v363, %v439
    %v441 = vrcp.pop %v190
    %v442 = vmul.f32 %v366, %v441
    %v443 = vrcp.pop %v193
    %v444 = vmul.f32 %v369, %v443
    %v445 = vrcp.pop %v196
    %v446 = vmul.f32 %v372, %v445
    %v447 = vrcp.pop %v199
    %v448 = vmul.f32 %v375, %v447
    %v449 = vrcp.pop %v202
    %v450 = vmul.f32 %v378, %v449
    %v451 = vrcp.pop %v205
    %v452 = vmul.f32 %v381, %v451
    %v453 = vrcp.pop %v208
    %v454 = vmul.f32 %v384, %v453
    %v455 = vrcp.pop %v211
    %v456 = vmul.f32 %v387, %v455
    %v457 = vrcp.pop %v214
    %v458 = vmul.f32 %v390, %v457
    %v459 = vrcp.pop %v217
    %v460 = vmul.f32 %v393, %v459
    %v461 = vrcp.pop %v220
    %v462 = vmul.f32 %v396, %v461
    %v463 = vrcp.pop %v223
    %v464 = vmul.f32 %v399, %v463
    %v465 = vrcp.pop %v226
    %v466 = vmul.f32 %v402, %v465
    %v467 = vsub.f32 1.0, %v436
    %v468 = vsub.f32 1.0, %v438
    %v469 = vsub.f32 1.0, %v440
    %v470 = vsub.f32 1.0, %v442
    %v471 = vsub.f32 1.0, %v444
    %v472 = vsub.f32 1.0, %v446
    %v473 = vsub.f32 1.0, %v448
    %v474 = vsub.f32 1.0, %v450
    %v475 = vsub.f32 1.0, %v452
    %v476 = vsub.f32 1.0, %v454
    %v477 = vsub.f32 1.0, %v456
    %v478 = vsub.f32 1.0, %v458
    %v479 = vsub.f32 1.0, %v460
    %v480 = vsub.f32 1.0, %v462
    %v481 = vsub.f32 1.0, %v464
    %v482 = vsub.f32 1.0, %v466
    %v483 = vmul.f32 %v467, %v467
    %v484 = vmul.f32 %v468, %v468
    %v485 = vmul.f32 %v469, %v469
    %v486 = vmul.f32 %v470, %v470
    %v487 = vmul.f32 %v471, %v471
    %v488 = vmul.f32 %v472, %v472
    %v489 = vmul.f32 %v473, %v473
    %v490 = vmul.f32 %v474, %v474
    %v491 = vmul.f32 %v475, %v475
    %v492 = vmul.f32 %v476, %v476
    %v493 = vmul.f32 %v477, %v477
    %v494 = vmul.f32 %v478, %v478
    %v495 = vmul.f32 %v479, %v479
    %v496 = vmul.f32 %v480, %v480
    %v497 = vmul.f32 %v481, %v481
    %v498 = vmul.f32 %v482, %v482
    %v499 = vmul.f32 %v483, %v419
    %v500 = vmul.f32 %v484, %v420
    %v501 = vmul.f32 %v485, %v421
    %v502 = vmul.f32 %v486, %v422
    %v503 = vmul.f32 %v487, %v423
    %v504 = vmul.f32 %v488, %v424
    %v505 = vmul.f32 %v489, %v425
    %v506 = vmul.f32 %v490, %v426
    %v507 = vmul.f32 %v491, %v427
    %v508 = vmul.f32 %v492, %v428
    %v509 = vmul.f32 %v493, %v429
    %v510 = vmul.f32 %v494, %v430
    %v511 = vmul.f32 %v495, %v431
    %v512 = vmul.f32 %v496, %v432
    %v513 = vmul.f32 %v497, %v433
    %v514 = vmul.f32 %v498, %v434
    %s515 = smul.u32 0, 128
    %v516 = vadd.s32 %v30, 32
    %v517 = vadd.s32 %v30, 40
    %v518 = vadd.s32 %v30, 48
    %v519 = vadd.s32 %v30, 56
    %v520 = vadd.s32 %v30, 64
    %v521 = vadd.s32 %v30, 72
    %v522 = vadd.s32 %v30, 80
    %v523 = vadd.s32 %v30, 88
    %v524 = vadd.s32 %v30, 96
    %v525 = vadd.s32 %v30, 104
    %v526 = vadd.s32 %v30, 112
    %v527 = vadd.s32 %v30, 120
    %v528 = vstv %s515
    %v529 = vadd.s32 %v528, %v30
    %v530 = vadd.s32 %v528, %v31
    %v531 = vadd.s32 %v528, %v32
    %v532 = vadd.s32 %v528, %v33
    %v533 = vadd.s32 %v528, %v516
    %v534 = vadd.s32 %v528, %v517
    %v535 = vadd.s32 %v528, %v518
    %v536 = vadd.s32 %v528, %v519
    %v537 = vadd.s32 %v528, %v520
    %v538 = vadd.s32 %v528, %v521
    %v539 = vadd.s32 %v528, %v522
    %v540 = vadd.s32 %v528, %v523
    %v541 = vadd.s32 %v528, %v524
    %v542 = vadd.s32 %v528, %v525
    %v543 = vadd.s32 %v528, %v526
    %v544 = vadd.s32 %v528, %v527
    %vm545 = vcmp.gt.f32.partialorder %v66, 0.5
    %vm546 = vcmp.gt.f32.partialorder %v67, 0.5
    %vm547 = vcmp.gt.f32.partialorder %v68, 0.5
    %vm548 = vcmp.gt.f32.partialorder %v69, 0.5
    %vm549 = vcmp.gt.f32.partialorder %v70, 0.5
    %vm550 = vcmp.gt.f32.partialorder %v71, 0.5
    %vm551 = vcmp.gt.f32.partialorder %v72, 0.5
    %vm552 = vcmp.gt.f32.partialorder %v73, 0.5
    %vm553 = vcmp.gt.f32.partialorder %v74, 0.5
    %vm554 = vcmp.gt.f32.partialorder %v75, 0.5
    %vm555 = vcmp.gt.f32.partialorder %v76, 0.5
    %vm556 = vcmp.gt.f32.partialorder %v77, 0.5
    %vm557 = vcmp.gt.f32.partialorder %v78, 0.5
    %vm558 = vcmp.gt.f32.partialorder %v79, 0.5
    %vm559 = vcmp.gt.f32.partialorder %v80, 0.5
    %vm560 = vcmp.gt.f32.partialorder %v81, 0.5
    %vm561 = vcmp.lt.s32.totalorder %v529, 8
    %vm562 = vcmp.lt.s32.totalorder %v530, 8
    %vm563 = vcmp.lt.s32.totalorder %v531, 8
    %vm564 = vcmp.lt.s32.totalorder %v532, 8
    %vm565 = vcmp.lt.s32.totalorder %v533, 8
    %vm566 = vcmp.lt.s32.totalorder %v534, 8
    %vm567 = vcmp.lt.s32.totalorder %v535, 8
    %vm568 = vcmp.lt.s32.totalorder %v536, 8
    %vm569 = vcmp.lt.s32.totalorder %v537, 8
    %vm570 = vcmp.lt.s32.totalorder %v538, 8
    %vm571 = vcmp.lt.s32.totalorder %v539, 8
    %vm572 = vcmp.lt.s32.totalorder %v540, 8
    %vm573 = vcmp.lt.s32.totalorder %v541, 8
    %vm574 = vcmp.lt.s32.totalorder %v542, 8
    %vm575 = vcmp.lt.s32.totalorder %v543, 8
    %vm576 = vcmp.lt.s32.totalorder %v544, 8
    %vm577 = vmxor %vm545, 1
    %vm578 = vmxor %vm546, 1
    %vm579 = vmxor %vm547, 1
    %vm580 = vmxor %vm548, 1
    %vm581 = vmxor %vm549, 1
    %vm582 = vmxor %vm550, 1
    %vm583 = vmxor %vm551, 1
    %vm584 = vmxor %vm552, 1
    %vm585 = vmxor %vm553, 1
    %vm586 = vmxor %vm554, 1
    %vm587 = vmxor %vm555, 1
    %vm588 = vmxor %vm556, 1
    %vm589 = vmxor %vm557, 1
    %vm590 = vmxor %vm558, 1
    %vm591 = vmxor %vm559, 1
    %vm592 = vmxor %vm560, 1
    %vm593 = vmand %vm561, %vm577
    %vm594 = vmand %vm562, %vm578
    %vm595 = vmand %vm563, %vm579
    %vm596 = vmand %vm564, %vm580
    %vm597 = vmand %vm565, %vm581
    %vm598 = vmand %vm566, %vm582
    %vm599 = vmand %vm567, %vm583
    %vm600 = vmand %vm568, %vm584
    %vm601 = vmand %vm569, %vm585
    %vm602 = vmand %vm570, %vm586
    %vm603 = vmand %vm571, %vm587
    %vm604 = vmand %vm572, %vm588
    %vm605 = vmand %vm573, %vm589
    %vm606 = vmand %vm574, %vm590
    %vm607 = vmand %vm575, %vm591
    %vm608 = vmand %vm576, %vm592
    %v609 = vsel %vm593, %v499, 0.0
    %v610 = vsel %vm594, %v500, 0.0
    %v611 = vsel %vm595, %v501, 0.0
    %v612 = vsel %vm596, %v502, 0.0
    %v613 = vsel %vm597, %v503, 0.0
    %v614 = vsel %vm598, %v504, 0.0
    %v615 = vsel %vm599, %v505, 0.0
    %v616 = vsel %vm600, %v506, 0.0
    %v617 = vsel %vm601, %v507, 0.0
    %v618 = vsel %vm602, %v508, 0.0
    %v619 = vsel %vm603, %v509, 0.0
    %v620 = vsel %vm604, %v510, 0.0
    %v621 = vsel %vm605, %v511, 0.0
    %v622 = vsel %vm606, %v512, 0.0
    %v623 = vsel %vm607, %v513, 0.0
    %v624 = vsel %vm608, %v514, 0.0
    %vm625 = vcmask 7168
    %v626 = vsel %vm625, %v609, 0.0
    %v627 = vsel %vm625, %v610, 0.0
    %v628 = vadd.f32 %v626, %v627
    %v629 = vsel %vm625, %v611, 0.0
    %v630 = vadd.f32 %v628, %v629
    %v631 = vsel %vm625, %v612, 0.0
    %v632 = vadd.f32 %v630, %v631
    %v633 = vsel %vm625, %v613, 0.0
    %v634 = vadd.f32 %v632, %v633
    %v635 = vsel %vm625, %v614, 0.0
    %v636 = vadd.f32 %v634, %v635
    %v637 = vsel %vm625, %v615, 0.0
    %v638 = vadd.f32 %v636, %v637
    %v639 = vsel %vm625, %v616, 0.0
    %v640 = vadd.f32 %v638, %v639
    %v641 = vsel %vm625, %v617, 0.0
    %v642 = vadd.f32 %v640, %v641
    %v643 = vsel %vm625, %v618, 0.0
    %v644 = vadd.f32 %v642, %v643
    %v645 = vsel %vm625, %v619, 0.0
    %v646 = vadd.f32 %v644, %v645
    %v647 = vsel %vm625, %v620, 0.0
    %v648 = vadd.f32 %v646, %v647
    %v649 = vsel %vm625, %v621, 0.0
    %v650 = vadd.f32 %v648, %v649
    %v651 = vsel %vm625, %v622, 0.0
    %v652 = vadd.f32 %v650, %v651
    %v653 = vsel %vm625, %v623, 0.0
    %v654 = vadd.f32 %v652, %v653
    %v655 = vsel %vm625, %v624, 0.0
    %v656 = vadd.f32 %v654, %v655
    %v657 = vrot.slane %v656, 4
    %v658 = vadd.f32 %v656, %v657
    %v659 = vrot.slane %v658, 2
    %v660 = vadd.f32 %v658, %v659
    %v661 = vrot.slane %v660, 1
    %v662 = vadd.f32 %v660, %v661
    %664 = vset.pattern.permute.xlu0 0
    %665 = vperm.xlu0 %664, %v662
    %v666 = vpop.permute.xlu0 %665
    %668 = vst [vmem:[#allocation2] sm:$0x1] %v666
    // Predicated region
    $region10: #{tpu_custom_call.1} parent=1 // pred_check
      _
    $region11: #{tpu_custom_call.1} parent=1 // pred_check_branch
      %670 = sbr.rel (0) target = $region13
    $region12: #{tpu_custom_call.1} parent=1 // pred_region
      %s672 = ssub.s32 16, 16
      %673 = vsyncadd [#allocation3], %s672
      %s675 = sshll.u32 [#allocation2], 4
      %s676 = int_to_ptr.vmem [resolvable:$true] %s675
      %678 = dma.vmem_to_hbm [thread:$0]  %s676, 16, %s2, [#allocation3]
    $region13: #{tpu_custom_call.1} parent=1 // pred_fallthru
      _
    // Predicated region
    $region14: #{tpu_custom_call.1} parent=1 // pred_check
      _
    $region15: #{tpu_custom_call.1} parent=1 // pred_check_branch
      %680 = sbr.rel (0) target = $region17
    $region16: #{tpu_custom_call.1} parent=1 // pred_region
      %681 = dma.done [#allocation3], 16
    $region17: #{tpu_custom_call.1} parent=1 // pred_fallthru
      _
    %682 = vsyncpa [#allocation3], 1

</llo_original>
